<compile_context>
chip_gen: v5e
topology: v5e:2x2
jax: 0.10.0
libtpu: 0.0.40
codegen_flags: <defaults>
</compile_context>

<pallas_src>
import jax
import jax.numpy as jnp
from jax.experimental import pallas as pl
from jax.experimental.pallas import tpu as pltpu


def _spectral_matmul_kernel(x_ref, w_ref, o_ref):
    # x_ref: (TM, B, 2*Cin)       packed [Xr | Xi] along the last axis
    # w_ref: (TM, 2*Cin, 2*Cout)  packed [[Wr, Wi], [-Wi, Wr]] block matrix
    # o_ref: (TM, B, 2*Cout)      packed [Or | Oi]
    # Per-frequency matmul on the MXU; frequency (m) is the batch dimension.
    o_ref[...] = jnp.einsum(
        "mbi,mio->mbo",
        x_ref[...],
        w_ref[...],
        preferred_element_type=jnp.float32,
    ).astype(o_ref.dtype)


def spectral_conv1d(x, w_real, w_imag, modes1):
    """Forward pass of SpectralConv1d.

    x      : (B, C_in, N) float32
    w_real : (C_in, C_out, modes1) float32   (real part of complex weights)
    w_imag : (C_in, C_out, modes1) float32   (imag part of complex weights)
    returns: (B, C_out, N) float32
    """
    B, Cin, N = x.shape
    Cout = w_real.shape[1]
    M = modes1
    n_freq = N // 2 + 1

    # ---- FFT (plain JAX / XLA) -------------------------------------------------------
    x_ft = jnp.fft.rfft(x, axis=-1)                        # (B, Cin, n_freq) complex64
    xr = jnp.real(x_ft[:, :, :M]).astype(jnp.float32)      # (B, Cin, M)
    xi = jnp.imag(x_ft[:, :, :M]).astype(jnp.float32)

    # ---- Pack real/imag and transpose to frequency-major, lane-dense layout -----------
    # x_pack[m, b, :] = [xr[b, :, m], xi[b, :, m]]                      -> (M, B, 2*Cin)
    x_pack = jnp.transpose(jnp.concatenate([xr, xi], axis=1), (2, 0, 1))

    # w_pack[m] = [[Wr[:, :, m],  Wi[:, :, m]],
    #              [-Wi[:, :, m], Wr[:, :, m]]]                          -> (M, 2Cin, 2Cout)
    w_top = jnp.concatenate([w_real, w_imag], axis=1)       # (Cin, 2*Cout, M)
    w_bot = jnp.concatenate([-w_imag, w_real], axis=1)      # (Cin, 2*Cout, M)
    w_pack = jnp.transpose(jnp.concatenate([w_top, w_bot], axis=0), (2, 0, 1))

    # ---- Frequency tiling: keep double-buffered working set well under scoped VMEM ----
    per_freq_bytes = 4 * (B * 2 * Cin + (2 * Cin) * (2 * Cout) + B * 2 * Cout)
    tm_cap = max(1, (8 * 1024 * 1024) // (2 * per_freq_bytes))   # ~8 MiB per buffer set
    TM = min(M, tm_cap)
    grid_m = pl.cdiv(M, TM)

    cost = pl.CostEstimate(
        flops=2 * M * B * (2 * Cin) * (2 * Cout),               # = 8*B*Cin*Cout*M
        transcendentals=0,
        bytes_accessed=4 * (M * B * 2 * Cin
                            + M * (2 * Cin) * (2 * Cout)
                            + M * B * 2 * Cout),
    )

    out_pack = pl.pallas_call(
        _spectral_matmul_kernel,
        grid=(grid_m,),
        in_specs=[
            pl.BlockSpec((TM, B, 2 * Cin), lambda m: (m, 0, 0)),
            pl.BlockSpec((TM, 2 * Cin, 2 * Cout), lambda m: (m, 0, 0)),
        ],
        out_specs=pl.BlockSpec((TM, B, 2 * Cout), lambda m: (m, 0, 0)),
        out_shape=jax.ShapeDtypeStruct((M, B, 2 * Cout), jnp.float32),
        compiler_params=pltpu.CompilerParams(dimension_semantics=("parallel",)),
        cost_estimate=cost,
    )(x_pack, w_pack)                                       # (M, B, 2*Cout)

    # ---- Unpack, zero-pad high frequencies (pad + complex, no scatter), inverse FFT ---
    out_r = jnp.transpose(out_pack[:, :, :Cout], (1, 2, 0))  # (B, Cout, M)
    out_i = jnp.transpose(out_pack[:, :, Cout:], (1, 2, 0))  # (B, Cout, M)
    out_ft_low = jax.lax.complex(out_r, out_i)               # (B, Cout, M) complex64
    out_ft = jnp.pad(out_ft_low, ((0, 0), (0, 0), (0, n_freq - M)))

    return jnp.fft.irfft(out_ft, n=N, axis=-1)               # (B, Cout, N) float32


if __name__ == "__main__":
    # Small shapes consistent with the module: batch=2, in=4, out=4, length=16, modes=8.
    B, Cin, Cout, N, M = 2, 4, 4, 16, 8

    key = jax.random.PRNGKey(0)
    kx, kwr, kwi = jax.random.split(key, 3)

    x = jax.random.normal(kx, (B, Cin, N), dtype=jnp.float32)

    # Deterministic parameter init mirroring:
    #   scale * torch.rand(Cin, Cout, modes1, dtype=cfloat)
    # i.e. real and imaginary parts each uniform in [0, 1), scaled by 1/(Cin*Cout).
    scale = 1.0 / (Cin * Cout)
    w_real = scale * jax.random.uniform(kwr, (Cin, Cout, M), dtype=jnp.float32)
    w_imag = scale * jax.random.uniform(kwi, (Cin, Cout, M), dtype=jnp.float32)

    y = spectral_conv1d(x, w_real, w_imag, M)
    y = jax.block_until_ready(y)
    assert y.shape == (B, Cout, N) and y.dtype == jnp.float32

    # Pure-JAX reference of the PyTorch forward pass.
    x_ft = jnp.fft.rfft(x, axis=-1)
    w_c = (w_real + 1j * w_imag).astype(jnp.complex64)
    out_ft_ref = jnp.zeros((B, Cout, N // 2 + 1), dtype=jnp.complex64)
    out_ft_ref = out_ft_ref.at[:, :, :M].set(
        jnp.einsum("bix,iox->box", x_ft[:, :, :M], w_c))
    y_ref = jnp.fft.irfft(out_ft_ref, n=N, axis=-1)
    assert jnp.allclose(y, y_ref, atol=1e-5, rtol=1e-5), "mismatch vs reference"

    print("KERNEL_OK")
</pallas_src>

<mosaic_0001>
module attributes {stable_mosaic.version = 11 : i64} {
  func.func @_spectral_matmul_kernel(%arg0: i32, %arg1: memref<8x2x8xf32, #tpu.memory_space<vmem>>, %arg2: memref<8x8x8xf32, #tpu.memory_space<vmem>>, %arg3: memref<8x2x8xf32, #tpu.memory_space<vmem>>) attributes {dimension_semantics = [#tpu.dimension_semantics<parallel>], iteration_bounds = array<i64: 1>, scalar_prefetch = 0 : i64, scratch_operands = 0 : i64, tpu.core_type = #tpu.core_type<tc>, window_params = [{transform_indices = @transform_0, window_bounds = array<i64: 8, 2, 8>}, {transform_indices = @transform_1, window_bounds = array<i64: 8, 8, 8>}, {transform_indices = @transform_2, window_bounds = array<i64: 8, 2, 8>}]} {
    %c0 = arith.constant 0 : index
    %c0_0 = arith.constant 0 : index
    %c0_1 = arith.constant 0 : index
    %0 = vector.load %arg1[%c0, %c0_0, %c0_1] : memref<8x2x8xf32, #tpu.memory_space<vmem>>, vector<8x2x8xf32>
    %c0_2 = arith.constant 0 : index
    %c0_3 = arith.constant 0 : index
    %c0_4 = arith.constant 0 : index
    %1 = vector.load %arg2[%c0_2, %c0_3, %c0_4] : memref<8x8x8xf32, #tpu.memory_space<vmem>>, vector<8x8x8xf32>
    "tpu.trace_start"() <{level = 10 : i32, message = "mbi,mio->mbo"}> : () -> ()
    %cst = arith.constant dense<0.000000e+00> : vector<8x2x8xf32>
    %2 = tpu.matmul %0, %1, %cst {dimension_numbers = #tpu.dot_dimension_numbers<[2], [1], [1], [2], [0, 0, 0, 1, 1, 2], [0], [0]>} : vector<8x2x8xf32>, vector<8x8x8xf32>, vector<8x2x8xf32> -> vector<8x2x8xf32>
    "tpu.trace_stop"() : () -> ()
    %c0_5 = arith.constant 0 : index
    %c0_6 = arith.constant 0 : index
    %c0_7 = arith.constant 0 : index
    %3 = vector.load %arg3[%c0_5, %c0_6, %c0_7] : memref<8x2x8xf32, #tpu.memory_space<vmem>>, vector<8x2x8xf32>
    tpu.vector_store %arg3[%c0_5, %c0_6, %c0_7], %2 {strides = array<i32>} : memref<8x2x8xf32, #tpu.memory_space<vmem>>, vector<8x2x8xf32>,
    return
  }
  func.func @transform_0(%arg0: i32) -> (i32, i32, i32) {
    %c0_i32 = arith.constant 0 : i32
    %c0_i32_0 = arith.constant 0 : i32
    %c0_i32_1 = arith.constant 0 : i32
    return %arg0, %c0_i32, %c0_i32_0 : i32, i32, i32
  }
  func.func @transform_1(%arg0: i32) -> (i32, i32, i32) {
    %c0_i32 = arith.constant 0 : i32
    %c0_i32_0 = arith.constant 0 : i32
    %c0_i32_1 = arith.constant 0 : i32
    return %arg0, %c0_i32, %c0_i32_0 : i32, i32, i32
  }
  func.func @transform_2(%arg0: i32) -> (i32, i32, i32) {
    %c0_i32 = arith.constant 0 : i32
    %c0_i32_0 = arith.constant 0 : i32
    %c0_i32_1 = arith.constant 0 : i32
    return %arg0, %c0_i32, %c0_i32_0 : i32, i32, i32
  }
}

</mosaic_0001>

<llo_original>
// kernel: tpu_custom_call.1
$region0: #{tpu_custom_call.1}
  #allocation0 [shape = 'u32[]', space=smem, size = 0x4, offset = 0x4, fixed_abs, tag = 'smem constant byte address 0x4 - core index']
  #allocation1 [shape = 'u32[72,128]{1,0:T(1,128)}', space=vmem, size = 0x9000, scoped, tag = 'internal scratch']
  %s0 = inlined_call_operand.hbm [shape: f32[8,2,8], index: 0, kind: input, shape index: {}]
  %s1 = inlined_call_operand.hbm [shape: f32[8,8,8], index: 1, kind: input, shape index: {}]
  %s2 = inlined_call_operand.hbm [shape: f32[8,2,8], index: 2, kind: output, shape index: {}]
  %s3 = sld [smem:[#allocation0]]
  $region26: #{tpu_custom_call.1} parent=0
    _
  %s5 = ssub.s32 1, %s3
  %s6 = scalar_select 0, %s5, %s3
  $region1: #{tpu_custom_call.1} parent=0
    #allocation2 [shape = 'u8[8192]{0}', space=vmem, size = 0x2000, scoped, tag = 'input window, operand 0, single buffered']
    #allocation3 [shape = 's32[1]{0}', space=sflag, size = 0x4, scoped, tag = 'scoped memory for tpu_custom_call.1']
    #allocation4 [shape = 's32[1]{0}', space=sflag, size = 0x4, scoped, tag = 'scoped memory for tpu_custom_call.1']
    #allocation5 [shape = 'u8[32768]{0}', space=vmem, size = 0x8000, scoped, tag = 'input window, operand 1, single buffered']
    #allocation6 [shape = 's32[1]{0}', space=sflag, size = 0x4, scoped, tag = 'scoped memory for tpu_custom_call.1']
    #allocation7 [shape = 'u8[8192]{0}', space=vmem, size = 0x2000, scoped, tag = 'output window, operand 0, single buffered']
    %7 = vsyncpa [#allocation3], 0
    %8 = vsyncpa [#allocation6], 0
    %9 = vsyncpa [#allocation4], 0
    // Predicated region
    $region2: #{tpu_custom_call.1} parent=1 // pred_check
      _
    $region3: #{tpu_custom_call.1} parent=1 // pred_check_branch
      %11 = sbr.rel (0) target = $region5
    $region4: #{tpu_custom_call.1} parent=1 // pred_region
      %13 = vsyncadd [#allocation3], 0
      %s14 = sshll.u32 %s0, 4
      %s15 = int_to_ptr.hbm [resolvable:$true] %s14
      %s16 = sshll.u32 [#allocation2], 4
      %s17 = int_to_ptr.vmem [resolvable:$true] %s16
      %22 = dma.hbm_to_vmem [thread:$0]  %s15, 256, %s17, [#allocation3], 32, 32, 2
    $region5: #{tpu_custom_call.1} parent=1 // pred_fallthru
      _
    // Predicated region
    $region6: #{tpu_custom_call.1} parent=1 // pred_check
      _
    $region7: #{tpu_custom_call.1} parent=1 // pred_check_branch
      %24 = sbr.rel (0) target = $region9
    $region8: #{tpu_custom_call.1} parent=1 // pred_region
      %26 = vsyncadd [#allocation6], 0
      %s27 = sshll.u32 %s1, 4
      %s28 = int_to_ptr.hbm [resolvable:$true] %s27
      %s29 = sshll.u32 [#allocation5], 4
      %s30 = int_to_ptr.vmem [resolvable:$true] %s29
      %35 = dma.hbm_to_vmem [thread:$0]  %s28, 1024, %s30, [#allocation6], 128, 128, 8
    $region9: #{tpu_custom_call.1} parent=1 // pred_fallthru
      _
    // Predicated region
    $region10: #{tpu_custom_call.1} parent=1 // pred_check
      _
    $region11: #{tpu_custom_call.1} parent=1 // pred_check_branch
      %37 = sbr.rel (0) target = $region13
    $region12: #{tpu_custom_call.1} parent=1 // pred_region
      %39 = dma.done [#allocation3], 256
    $region13: #{tpu_custom_call.1} parent=1 // pred_fallthru
      _
    // Predicated region
    $region14: #{tpu_custom_call.1} parent=1 // pred_check
      _
    $region15: #{tpu_custom_call.1} parent=1 // pred_check_branch
      %41 = sbr.rel (0) target = $region17
    $region16: #{tpu_custom_call.1} parent=1 // pred_region
      %43 = dma.done [#allocation6], 1024
    $region17: #{tpu_custom_call.1} parent=1 // pred_fallthru
      _
    %v44 = vld [vmem:[#allocation2] sm:$0x3]
    %v45 = vld [vmem:[#allocation2 + $0x2] sm:$0x3]
    %v46 = vld [vmem:[#allocation2 + $0x4] sm:$0x3]
    %v47 = vld [vmem:[#allocation2 + $0x6] sm:$0x3]
    %v48 = vld [vmem:[#allocation2 + $0x8] sm:$0x3]
    %v49 = vld [vmem:[#allocation2 + $0xa] sm:$0x3]
    %v50 = vld [vmem:[#allocation2 + $0xc] sm:$0x3]
    %v51 = vld [vmem:[#allocation2 + $0xe] sm:$0x3]
    %v52 = vld [vmem:[#allocation5] sm:$0xff]
    %v53 = vld [vmem:[#allocation5 + $0x8] sm:$0xff]
    %v54 = vld [vmem:[#allocation5 + $0x10] sm:$0xff]
    %v55 = vld [vmem:[#allocation5 + $0x18] sm:$0xff]
    %v56 = vld [vmem:[#allocation5 + $0x20] sm:$0xff]
    %v57 = vld [vmem:[#allocation5 + $0x28] sm:$0xff]
    %v58 = vld [vmem:[#allocation5 + $0x30] sm:$0xff]
    %v59 = vld [vmem:[#allocation5 + $0x38] sm:$0xff]
    %vm60 = vcmask 64512
    %v62 = vsel %vm60, %v44, 0
    %64 = vmatpush.msra.mxu0 0.0
    %65 = vmatpush.msra.mxu0 0.0
    %66 = vmatpush.msra.mxu0 0.0
    %67 = vmatpush.msra.mxu0 0.0
    %68 = vmatpush.msra.mxu0 0.0
    %69 = vmatpush.msra.mxu0 0.0
    %70 = vmatpush.msra.mxu0 0.0
    %71 = vmatpush.msra.mxu0 0.0
    %72 = vmatpush.msra.mxu0 0.0
    %73 = vmatpush.msra.mxu0 0.0
    %74 = vmatpush.msra.mxu0 0.0
    %75 = vmatpush.msra.mxu0 0.0
    %76 = vmatpush.msra.mxu0 0.0
    %77 = vmatpush.msra.mxu0 0.0
    %78 = vmatpush.msra.mxu0 0.0
    %79 = vmatpush.msra.mxu0 %v52
    %80 = vmatmul.f32.gmra.mxu0 %v62
    %v81 = vpop.f32.mrf.mxu0
    %v82 = vadd.f32 0.0, %v81
    %83 = vdwg.mxu0
    %v85 = vsel %vm60, %v45, 0
    %87 = vmatpush.msra.mxu0 0.0
    %88 = vmatpush.msra.mxu0 0.0
    %89 = vmatpush.msra.mxu0 0.0
    %90 = vmatpush.msra.mxu0 0.0
    %91 = vmatpush.msra.mxu0 0.0
    %92 = vmatpush.msra.mxu0 0.0
    %93 = vmatpush.msra.mxu0 0.0
    %94 = vmatpush.msra.mxu0 0.0
    %95 = vmatpush.msra.mxu0 0.0
    %96 = vmatpush.msra.mxu0 0.0
    %97 = vmatpush.msra.mxu0 0.0
    %98 = vmatpush.msra.mxu0 0.0
    %99 = vmatpush.msra.mxu0 0.0
    %100 = vmatpush.msra.mxu0 0.0
    %101 = vmatpush.msra.mxu0 0.0
    %102 = vmatpush.msra.mxu0 %v53
    %103 = vmatmul.f32.gmra.mxu0 %v85
    %v104 = vpop.f32.mrf.mxu0
    %v105 = vadd.f32 0.0, %v104
    %106 = vdwg.mxu0
    %v108 = vsel %vm60, %v46, 0
    %110 = vmatpush.msra.mxu0 0.0
    %111 = vmatpush.msra.mxu0 0.0
    %112 = vmatpush.msra.mxu0 0.0
    %113 = vmatpush.msra.mxu0 0.0
    %114 = vmatpush.msra.mxu0 0.0
    %115 = vmatpush.msra.mxu0 0.0
    %116 = vmatpush.msra.mxu0 0.0
    %117 = vmatpush.msra.mxu0 0.0
    %118 = vmatpush.msra.mxu0 0.0
    %119 = vmatpush.msra.mxu0 0.0
    %120 = vmatpush.msra.mxu0 0.0
    %121 = vmatpush.msra.mxu0 0.0
    %122 = vmatpush.msra.mxu0 0.0
    %123 = vmatpush.msra.mxu0 0.0
    %124 = vmatpush.msra.mxu0 0.0
    %125 = vmatpush.msra.mxu0 %v54
    %126 = vmatmul.f32.gmra.mxu0 %v108
    %v127 = vpop.f32.mrf.mxu0
    %v128 = vadd.f32 0.0, %v127
    %129 = vdwg.mxu0
    %v131 = vsel %vm60, %v47, 0
    %133 = vmatpush.msra.mxu0 0.0
    %134 = vmatpush.msra.mxu0 0.0
    %135 = vmatpush.msra.mxu0 0.0
    %136 = vmatpush.msra.mxu0 0.0
    %137 = vmatpush.msra.mxu0 0.0
    %138 = vmatpush.msra.mxu0 0.0
    %139 = vmatpush.msra.mxu0 0.0
    %140 = vmatpush.msra.mxu0 0.0
    %141 = vmatpush.msra.mxu0 0.0
    %142 = vmatpush.msra.mxu0 0.0
    %143 = vmatpush.msra.mxu0 0.0
    %144 = vmatpush.msra.mxu0 0.0
    %145 = vmatpush.msra.mxu0 0.0
    %146 = vmatpush.msra.mxu0 0.0
    %147 = vmatpush.msra.mxu0 0.0
    %148 = vmatpush.msra.mxu0 %v55
    %149 = vmatmul.f32.gmra.mxu0 %v131
    %v150 = vpop.f32.mrf.mxu0
    %v151 = vadd.f32 0.0, %v150
    %152 = vdwg.mxu0
    %v154 = vsel %vm60, %v48, 0
    %156 = vmatpush.msra.mxu0 0.0
    %157 = vmatpush.msra.mxu0 0.0
    %158 = vmatpush.msra.mxu0 0.0
    %159 = vmatpush.msra.mxu0 0.0
    %160 = vmatpush.msra.mxu0 0.0
    %161 = vmatpush.msra.mxu0 0.0
    %162 = vmatpush.msra.mxu0 0.0
    %163 = vmatpush.msra.mxu0 0.0
    %164 = vmatpush.msra.mxu0 0.0
    %165 = vmatpush.msra.mxu0 0.0
    %166 = vmatpush.msra.mxu0 0.0
    %167 = vmatpush.msra.mxu0 0.0
    %168 = vmatpush.msra.mxu0 0.0
    %169 = vmatpush.msra.mxu0 0.0
    %170 = vmatpush.msra.mxu0 0.0
    %171 = vmatpush.msra.mxu0 %v56
    %172 = vmatmul.f32.gmra.mxu0 %v154
    %v173 = vpop.f32.mrf.mxu0
    %v174 = vadd.f32 0.0, %v173
    %175 = vdwg.mxu0
    %v177 = vsel %vm60, %v49, 0
    %179 = vmatpush.msra.mxu0 0.0
    %180 = vmatpush.msra.mxu0 0.0
    %181 = vmatpush.msra.mxu0 0.0
    %182 = vmatpush.msra.mxu0 0.0
    %183 = vmatpush.msra.mxu0 0.0
    %184 = vmatpush.msra.mxu0 0.0
    %185 = vmatpush.msra.mxu0 0.0
    %186 = vmatpush.msra.mxu0 0.0
    %187 = vmatpush.msra.mxu0 0.0
    %188 = vmatpush.msra.mxu0 0.0
    %189 = vmatpush.msra.mxu0 0.0
    %190 = vmatpush.msra.mxu0 0.0
    %191 = vmatpush.msra.mxu0 0.0
    %192 = vmatpush.msra.mxu0 0.0
    %193 = vmatpush.msra.mxu0 0.0
    %194 = vmatpush.msra.mxu0 %v57
    %195 = vmatmul.f32.gmra.mxu0 %v177
    %v196 = vpop.f32.mrf.mxu0
    %v197 = vadd.f32 0.0, %v196
    %198 = vdwg.mxu0
    %v200 = vsel %vm60, %v50, 0
    %202 = vmatpush.msra.mxu0 0.0
    %203 = vmatpush.msra.mxu0 0.0
    %204 = vmatpush.msra.mxu0 0.0
    %205 = vmatpush.msra.mxu0 0.0
    %206 = vmatpush.msra.mxu0 0.0
    %207 = vmatpush.msra.mxu0 0.0
    %208 = vmatpush.msra.mxu0 0.0
    %209 = vmatpush.msra.mxu0 0.0
    %210 = vmatpush.msra.mxu0 0.0
    %211 = vmatpush.msra.mxu0 0.0
    %212 = vmatpush.msra.mxu0 0.0
    %213 = vmatpush.msra.mxu0 0.0
    %214 = vmatpush.msra.mxu0 0.0
    %215 = vmatpush.msra.mxu0 0.0
    %216 = vmatpush.msra.mxu0 0.0
    %217 = vmatpush.msra.mxu0 %v58
    %218 = vmatmul.f32.gmra.mxu0 %v200
    %v219 = vpop.f32.mrf.mxu0
    %v220 = vadd.f32 0.0, %v219
    %221 = vdwg.mxu0
    %v223 = vsel %vm60, %v51, 0
    %225 = vmatpush.msra.mxu0 0.0
    %226 = vmatpush.msra.mxu0 0.0
    %227 = vmatpush.msra.mxu0 0.0
    %228 = vmatpush.msra.mxu0 0.0
    %229 = vmatpush.msra.mxu0 0.0
    %230 = vmatpush.msra.mxu0 0.0
    %231 = vmatpush.msra.mxu0 0.0
    %232 = vmatpush.msra.mxu0 0.0
    %233 = vmatpush.msra.mxu0 0.0
    %234 = vmatpush.msra.mxu0 0.0
    %235 = vmatpush.msra.mxu0 0.0
    %236 = vmatpush.msra.mxu0 0.0
    %237 = vmatpush.msra.mxu0 0.0
    %238 = vmatpush.msra.mxu0 0.0
    %239 = vmatpush.msra.mxu0 0.0
    %240 = vmatpush.msra.mxu0 %v59
    %241 = vmatmul.f32.gmra.mxu0 %v223
    %v242 = vpop.f32.mrf.mxu0
    %v243 = vadd.f32 0.0, %v242
    %244 = vdwg.mxu0
    %vm245 = vcmask 58368
    %246 = vst.msk [vmem:[#allocation7] sm:$0x3] %vm245, %v82
    %247 = vst.msk [vmem:[#allocation7 + $0x2] sm:$0x3] %vm245, %v105
    %248 = vst.msk [vmem:[#allocation7 + $0x4] sm:$0x3] %vm245, %v128
    %249 = vst.msk [vmem:[#allocation7 + $0x6] sm:$0x3] %vm245, %v151
    %250 = vst.msk [vmem:[#allocation7 + $0x8] sm:$0x3] %vm245, %v174
    %251 = vst.msk [vmem:[#allocation7 + $0xa] sm:$0x3] %vm245, %v197
    %252 = vst.msk [vmem:[#allocation7 + $0xc] sm:$0x3] %vm245, %v220
    %253 = vst.msk [vmem:[#allocation7 + $0xe] sm:$0x3] %vm245, %v243
    // Predicated region
    $region18: #{tpu_custom_call.1} parent=1 // pred_check
      _
    $region19: #{tpu_custom_call.1} parent=1 // pred_check_branch
      %255 = sbr.rel (0) target = $region21
    $region20: #{tpu_custom_call.1} parent=1 // pred_region
      %257 = vsyncadd [#allocation4], 0
      %s258 = sshll.u32 [#allocation7], 4
      %s259 = int_to_ptr.vmem [resolvable:$true] %s258
      %s260 = sshll.u32 %s2, 4
      %s261 = int_to_ptr.hbm [resolvable:$true] %s260
      %266 = dma.vmem_to_hbm [thread:$0]  %s259, 256, %s261, [#allocation4], 32, 32, 2
    $region21: #{tpu_custom_call.1} parent=1 // pred_fallthru
      _
    // Predicated region
    $region22: #{tpu_custom_call.1} parent=1 // pred_check
      _
    $region23: #{tpu_custom_call.1} parent=1 // pred_check_branch
      %268 = sbr.rel (0) target = $region25
    $region24: #{tpu_custom_call.1} parent=1 // pred_region
      %270 = dma.done [#allocation4], 256
    $region25: #{tpu_custom_call.1} parent=1 // pred_fallthru
      _
    %271 = vsyncpa [#allocation3], 1
    %272 = vsyncpa [#allocation6], 1
    %273 = vsyncpa [#allocation4], 1

</llo_original>
